<compile_context>
chip_gen: v6e
topology: v6e:2x2x1
jax: 0.10.0
libtpu: 0.0.40
codegen_flags: <defaults>
</compile_context>

<pallas_src>
import functools

import jax
import jax.numpy as jnp
from jax import lax
from jax.experimental import pallas as pl
from jax.experimental.pallas import tpu as pltpu

EPS = 1e-5                    # PyTorch BatchNorm1d default eps
LANE = 128
ROW_TILE_MAX = 512            # (512, Lp) f32 tile = a few MiB; 2-deep buffers fit everywhere
VMEM_LIMIT = 32 * 1024 * 1024  # explicit scoped-VMEM limit (raises v5e's 16 MiB default)


def _sum_all_2d(v):
    """Full reduction of a 2-D value to shape (1, 1) via two single-axis sums."""
    return jnp.sum(jnp.sum(v, axis=1, keepdims=True), axis=0, keepdims=True)


def _lane_dense_conv(x_ref, w_ref, xz_ref):
    """ConvTranspose1d(1,1,K) on one row tile, bias folded out.

    x_ref : (rows, L_in) VMEM f32  -- input tile (unpadded lanes)
    w_ref : (K,)         SMEM f32  -- conv taps
    xz_ref: (rows, Lp)   VMEM f32  -- lane-dense scratch, Lp = ceil128(L_out)

    Returns o1 (rows, Lp): conv output in lanes [0, L_out), EXACT zeros in
    lanes [L_out, Lp), so unmasked sums over o1 are exact.
    """
    l_in = x_ref.shape[1]
    n_taps = w_ref.shape[0]

    # Zero-pad into the lane-dense scratch inside the kernel (no padded slab
    # is ever materialized in HBM).
    xz_ref[...] = jnp.zeros_like(xz_ref)
    xz_ref[:, :l_in] = x_ref[...]
    xz = xz_ref[...]

    # o1[n, t] = sum_k x[n, t-k] * w[k].  The circular roll only wraps zeros
    # because Lp >= L_out = L_in + K - 1 (asserted in the wrapper).  Two
    # accumulators keep the tap chain from being one serial dependency.
    acc_a = xz * w_ref[0]
    acc_b = None
    for k in range(1, n_taps):
        term = pltpu.roll(xz, shift=k, axis=1) * w_ref[k]
        if k % 2 == 1:
            acc_b = term if acc_b is None else acc_b + term
        else:
            acc_a = acc_a + term
    return acc_a if acc_b is None else acc_a + acc_b


def _stats_kernel(x_ref, w_ref, s1_ref, s2_ref, xz_ref):
    """Phase 1: accumulate sum / sumsq of the conv output across row tiles."""
    @pl.when(pl.program_id(0) == 0)
    def _():
        s1_ref[...] = jnp.zeros_like(s1_ref)
        s2_ref[...] = jnp.zeros_like(s2_ref)

    o1 = _lane_dense_conv(x_ref, w_ref, xz_ref)
    s1_ref[...] += _sum_all_2d(o1)
    s2_ref[...] += _sum_all_2d(o1 * o1)


def _norm_kernel(scale_ref, x_ref, w_ref, o_ref, xz_ref, *, l_out):
    """Phase 2: recompute the cheap conv and normalize with the batch stats."""
    o1 = _lane_dense_conv(x_ref, w_ref, xz_ref)
    y = (o1 - scale_ref[0]) * scale_ref[1]      # (o1 - mean) * inv_std
    o_ref[...] = y[:, :l_out]


def convT_bn(x_ncl, weight, bias=None):
    """x_ncl: (N, 1, L_in) f32; weight: (1, 1, K) f32; bias: (1,) f32 (ignored:
    a channel-constant bias cancels exactly under batch-statistic BatchNorm).
    Returns (N, 1, L_out), L_out = L_in + K - 1."""
    del bias
    N, C, L_in = x_ncl.shape
    assert C == 1
    K = int(weight.shape[-1])
    L_out = L_in + K - 1
    Lp = ((L_out + LANE - 1) // LANE) * LANE
    assert Lp >= L_out  # zero-wrap safety for the in-kernel lane rolls

    rows = N * C
    x2d = x_ncl.reshape(rows, L_in).astype(jnp.float32)
    w1d = weight.reshape(K).astype(jnp.float32)

    # Row tiling: 512-row tiles at realistic N, one 8-aligned tile for tiny N.
    # Rows are zero-padded to a tile multiple only when needed; zero rows give
    # a zero conv output (contribute nothing to the stats) and are sliced off.
    if rows >= ROW_TILE_MAX:
        row_tile = ROW_TILE_MAX
    else:
        row_tile = ((rows + 7) // 8) * 8
    rows_p = ((rows + row_tile - 1) // row_tile) * row_tile
    if rows_p != rows:
        x2d = jnp.zeros((rows_p, L_in), jnp.float32).at[:rows].set(x2d)
    n_tiles = rows_p // row_tile

    x_spec = pl.BlockSpec((row_tile, L_in), lambda i: (i, 0))
    w_spec = pl.BlockSpec(memory_space=pltpu.SMEM)
    scratch = [pltpu.VMEM((row_tile, Lp), jnp.float32)]

    # ---- Phase 1: batch statistics (reduction over row tiles). ----
    s1, s2 = pl.pallas_call(
        _stats_kernel,
        out_shape=(jax.ShapeDtypeStruct((1, 1), jnp.float32),
                   jax.ShapeDtypeStruct((1, 1), jnp.float32)),
        grid=(n_tiles,),
        in_specs=[x_spec, w_spec],
        out_specs=(pl.BlockSpec((1, 1), lambda i: (0, 0)),
                   pl.BlockSpec((1, 1), lambda i: (0, 0))),
        scratch_shapes=scratch,
        compiler_params=pltpu.CompilerParams(
            dimension_semantics=("arbitrary",),
            vmem_limit_bytes=VMEM_LIMIT),
    )(x2d, w1d)

    # Tiny scalar epilogue (plain XLA): mean / inv_std from the accumulated sums.
    n_valid = float(rows * L_out)           # pad rows / pad lanes are exact zeros
    mean = s1[0, 0] / n_valid
    var = jnp.maximum(s2[0, 0] / n_valid - mean * mean, 0.0)
    inv_std = lax.rsqrt(var + EPS)
    scale = jnp.stack([mean, inv_std])      # (2,) f32, read from SMEM in phase 2

    # ---- Phase 2: normalize (independent tiles -> "parallel"; 2 TCs on v7x). ----
    out2d = pl.pallas_call(
        functools.partial(_norm_kernel, l_out=L_out),
        out_shape=jax.ShapeDtypeStruct((rows_p, L_out), jnp.float32),
        grid=(n_tiles,),
        in_specs=[pl.BlockSpec(memory_space=pltpu.SMEM), x_spec, w_spec],
        out_specs=pl.BlockSpec((row_tile, L_out), lambda i: (i, 0)),
        scratch_shapes=scratch,
        compiler_params=pltpu.CompilerParams(
            dimension_semantics=("parallel",),
            vmem_limit_bytes=VMEM_LIMIT),
    )(scale, x2d, w1d)

    if rows_p != rows:
        out2d = out2d[:rows]
    return out2d.reshape(N, C, L_out)


def reference(x_ncl, weight, bias):
    """Pure-JAX ConvTranspose1d(1,1,K) + BatchNorm1d(1, affine=False) with the
    bias INCLUDED and centered variance, to verify the kernel's shortcuts."""
    N, C, L_in = x_ncl.shape
    K = weight.shape[-1]
    L_out = L_in + K - 1
    w = weight.reshape(K)
    o1 = jnp.zeros((N, 1, L_out), jnp.float32)
    for kk in range(K):
        o1 = o1.at[:, :, kk:kk + L_in].add(x_ncl * w[kk])
    o1 = o1 + bias.reshape(1, 1, 1)
    mean = jnp.mean(o1)
    var = jnp.mean((o1 - mean) ** 2)
    return (o1 - mean) / jnp.sqrt(var + EPS)


if __name__ == "__main__":
    key = jax.random.PRNGKey(0)
    kx, kw, kb = jax.random.split(key, 3)

    # Module-implied shapes: x = (1, 1, 3), ConvTranspose1d(1, 1, 3).
    x = jax.random.normal(kx, (1, 1, 3), dtype=jnp.float32)
    bound = (1.0 / 3.0) ** 0.5   # PyTorch init bound: sqrt(1 / (C_in * K))
    weight = jax.random.uniform(kw, (1, 1, 3), jnp.float32, -bound, bound)
    bias = jax.random.uniform(kb, (1,), jnp.float32, -bound, bound)

    out = convT_bn(x, weight, bias)
    out = jax.block_until_ready(out)

    ref = reference(x, weight, bias)
    assert out.shape == (1, 1, 5), out.shape
    assert jnp.allclose(out, ref, atol=1e-5, rtol=1e-5), (out, ref)

    print("KERNEL_OK")
</pallas_src>

<mosaic_0001>
module attributes {stable_mosaic.version = 11 : i64} {
  func.func @_stats_kernel(%arg0: i32, %arg1: memref<8x3xf32, #tpu.memory_space<vmem>>, %arg2: memref<3xf32, #tpu.memory_space<smem>>, %arg3: memref<1x1xf32, #tpu.memory_space<vmem>>, %arg4: memref<1x1xf32, #tpu.memory_space<vmem>>, %arg5: memref<8x128xf32, #tpu.memory_space<vmem>>) attributes {dimension_semantics = [#tpu.dimension_semantics<arbitrary>], iteration_bounds = array<i64: 1>, scalar_prefetch = 0 : i64, scratch_operands = 1 : i64, tpu.core_type = #tpu.core_type<tc>, window_params = [{transform_indices = @transform_0, window_bounds = array<i64: 8, 3>}, {transform_indices = @transform_1, window_bounds = array<i64: 3>}, {pipeline_mode = #tpu.pipeline_mode<synchronous>, transform_indices = @transform_2, window_bounds = array<i64: 1, 1>}, {pipeline_mode = #tpu.pipeline_mode<synchronous>, transform_indices = @transform_3, window_bounds = array<i64: 1, 1>}]} {
    %c0_i32 = arith.constant 0 : i32
    %0 = arith.cmpi eq, %arg0, %c0_i32 : i32
    %1 = arith.extui %0 : i1 to i32
    %c0_i32_0 = arith.constant 0 : i32
    %2 = arith.cmpi ne, %1, %c0_i32_0 : i32
    scf.if %2 {
      %cst_21 = arith.constant 0.000000e+00 : f32
      %36 = vector.broadcast %cst_21 : f32 to vector<1x1xf32>
      %c0_22 = arith.constant 0 : index
      %c0_23 = arith.constant 0 : index
      %37 = vector.load %arg3[%c0_22, %c0_23] : memref<1x1xf32, #tpu.memory_space<vmem>>, vector<1x1xf32>
      tpu.vector_store %arg3[%c0_22, %c0_23], %36 {strides = array<i32>} : memref<1x1xf32, #tpu.memory_space<vmem>>, vector<1x1xf32>,
      %cst_24 = arith.constant 0.000000e+00 : f32
      %38 = vector.broadcast %cst_24 : f32 to vector<1x1xf32>
      %c0_25 = arith.constant 0 : index
      %c0_26 = arith.constant 0 : index
      %39 = vector.load %arg4[%c0_25, %c0_26] : memref<1x1xf32, #tpu.memory_space<vmem>>, vector<1x1xf32>
      tpu.vector_store %arg4[%c0_25, %c0_26], %38 {strides = array<i32>} : memref<1x1xf32, #tpu.memory_space<vmem>>, vector<1x1xf32>,
    } else {
    }
    %cst = arith.constant 0.000000e+00 : f32
    %3 = vector.broadcast %cst : f32 to vector<8x128xf32>
    %c0 = arith.constant 0 : index
    %c0_1 = arith.constant 0 : index
    %4 = vector.load %arg5[%c0, %c0_1] : memref<8x128xf32, #tpu.memory_space<vmem>>, vector<8x128xf32>
    tpu.vector_store %arg5[%c0, %c0_1], %3 {strides = array<i32>} : memref<8x128xf32, #tpu.memory_space<vmem>>, vector<8x128xf32>,
    %c0_2 = arith.constant 0 : index
    %c0_3 = arith.constant 0 : index
    %5 = vector.load %arg1[%c0_2, %c0_3] : memref<8x3xf32, #tpu.memory_space<vmem>>, vector<8x3xf32>
    %c0_4 = arith.constant 0 : index
    %c0_5 = arith.constant 0 : index
    %6 = vector.load %arg5[%c0_4, %c0_5] : memref<8x128xf32, #tpu.memory_space<vmem>>, vector<8x3xf32>
    tpu.vector_store %arg5[%c0_4, %c0_5], %5 {strides = array<i32>} : memref<8x128xf32, #tpu.memory_space<vmem>>, vector<8x3xf32>,
    %c0_6 = arith.constant 0 : index
    %c0_7 = arith.constant 0 : index
    %7 = vector.load %arg5[%c0_6, %c0_7] : memref<8x128xf32, #tpu.memory_space<vmem>>, vector<8x128xf32>
    %c0_8 = arith.constant 0 : index
    %8 = memref.load %arg2[%c0_8] : memref<3xf32, #tpu.memory_space<smem>>
    %9 = vector.broadcast %8 : f32 to vector<8x128xf32>
    %10 = arith.mulf %7, %9 : vector<8x128xf32>
    %c1_i32 = arith.constant 1 : i32
    %11 = tpu.dynamic_rotate %7 by %c1_i32 dim 1 : vector<8x128xf32>, i32 -> vector<8x128xf32>
    %c1 = arith.constant 1 : index
    %12 = memref.load %arg2[%c1] : memref<3xf32, #tpu.memory_space<smem>>
    %13 = vector.broadcast %12 : f32 to vector<8x128xf32>
    %14 = arith.mulf %11, %13 : vector<8x128xf32>
    %c2_i32 = arith.constant 2 : i32
    %15 = tpu.dynamic_rotate %7 by %c2_i32 dim 1 : vector<8x128xf32>, i32 -> vector<8x128xf32>
    %c2 = arith.constant 2 : index
    %16 = memref.load %arg2[%c2] : memref<3xf32, #tpu.memory_space<smem>>
    %17 = vector.broadcast %16 : f32 to vector<8x128xf32>
    %18 = arith.mulf %15, %17 : vector<8x128xf32>
    %19 = arith.addf %10, %18 : vector<8x128xf32>
    %20 = arith.addf %19, %14 : vector<8x128xf32>
    %c0_9 = arith.constant 0 : index
    %c0_10 = arith.constant 0 : index
    %21 = vector.load %arg3[%c0_9, %c0_10] : memref<1x1xf32, #tpu.memory_space<vmem>>, vector<1x1xf32>
    %cst_11 = arith.constant dense<0.000000e+00> : vector<8xf32>
    %22 = vector.multi_reduction <add>, %20, %cst_11 [1] : vector<8x128xf32> to vector<8xf32>
    %23 = vector.shape_cast %22 : vector<8xf32> to vector<8x1xf32>
    %cst_12 = arith.constant dense<0.000000e+00> : vector<1xf32>
    %24 = vector.multi_reduction <add>, %23, %cst_12 [0] : vector<8x1xf32> to vector<1xf32>
    %25 = vector.shape_cast %24 : vector<1xf32> to vector<1x1xf32>
    %26 = arith.addf %21, %25 : vector<1x1xf32>
    %c0_13 = arith.constant 0 : index
    %c0_14 = arith.constant 0 : index
    %27 = vector.load %arg3[%c0_13, %c0_14] : memref<1x1xf32, #tpu.memory_space<vmem>>, vector<1x1xf32>
    tpu.vector_store %arg3[%c0_13, %c0_14], %26 {strides = array<i32>} : memref<1x1xf32, #tpu.memory_space<vmem>>, vector<1x1xf32>,
    %c0_15 = arith.constant 0 : index
    %c0_16 = arith.constant 0 : index
    %28 = vector.load %arg4[%c0_15, %c0_16] : memref<1x1xf32, #tpu.memory_space<vmem>>, vector<1x1xf32>
    %29 = arith.mulf %20, %20 : vector<8x128xf32>
    %cst_17 = arith.constant dense<0.000000e+00> : vector<8xf32>
    %30 = vector.multi_reduction <add>, %29, %cst_17 [1] : vector<8x128xf32> to vector<8xf32>
    %31 = vector.shape_cast %30 : vector<8xf32> to vector<8x1xf32>
    %cst_18 = arith.constant dense<0.000000e+00> : vector<1xf32>
    %32 = vector.multi_reduction <add>, %31, %cst_18 [0] : vector<8x1xf32> to vector<1xf32>
    %33 = vector.shape_cast %32 : vector<1xf32> to vector<1x1xf32>
    %34 = arith.addf %28, %33 : vector<1x1xf32>
    %c0_19 = arith.constant 0 : index
    %c0_20 = arith.constant 0 : index
    %35 = vector.load %arg4[%c0_19, %c0_20] : memref<1x1xf32, #tpu.memory_space<vmem>>, vector<1x1xf32>
    tpu.vector_store %arg4[%c0_19, %c0_20], %34 {strides = array<i32>} : memref<1x1xf32, #tpu.memory_space<vmem>>, vector<1x1xf32>,
    return
  }
  func.func @transform_0(%arg0: i32) -> (i32, i32) {
    %c0_i32 = arith.constant 0 : i32
    %c0_i32_0 = arith.constant 0 : i32
    return %arg0, %c0_i32 : i32, i32
  }
  func.func @transform_1(%arg0: i32) -> i32 {
    %c0_i32 = arith.constant 0 : i32
    %c0_i32_0 = arith.constant 0 : i32
    return %c0_i32 : i32
  }
  func.func @transform_2(%arg0: i32) -> (i32, i32) {
    %c0_i32 = arith.constant 0 : i32
    %c0_i32_0 = arith.constant 0 : i32
    %c0_i32_1 = arith.constant 0 : i32
    return %c0_i32, %c0_i32_0 : i32, i32
  }
  func.func @transform_3(%arg0: i32) -> (i32, i32) {
    %c0_i32 = arith.constant 0 : i32
    %c0_i32_0 = arith.constant 0 : i32
    %c0_i32_1 = arith.constant 0 : i32
    return %c0_i32, %c0_i32_0 : i32, i32
  }
}

</mosaic_0001>

<llo_original>
// kernel: tpu_custom_call.1
$region0: #{tpu_custom_call.1}
  #allocation0 [shape = 'u32[]', space=smem, size = 0x4, offset = 0x4, fixed_abs, tag = 'smem constant byte address 0x4 - core index']
  #allocation1 [shape = 'u32[144,128]{1,0:T(1,128)}', space=vmem, size = 0x12000, scoped, tag = 'internal scratch']
  #allocation2 [shape = 'f32[8,128]{1,0:T(8,128)}', space=vmem, size = 0x1000, scoped, tag = 'scratch operand']
  %s0 = inlined_call_operand.vmem [shape: f32[8,3], index: 0, kind: input, shape index: {}]
  %s1 = inlined_call_operand.vmem [shape: f32[3], index: 1, kind: input, shape index: {}]
  %s2 = inlined_call_operand.hbm [shape: f32[1,1], index: 2, kind: output, shape index: {0}]
  %s3 = inlined_call_operand.hbm [shape: f32[1,1], index: 3, kind: output, shape index: {1}]
  %4 = xla_tuple %s2, %s3
  %s5 = sld [smem:[#allocation0]]
  $region34: #{tpu_custom_call.1} parent=0
    _
  %s7 = ssub.s32 1, %s5
  %s8 = scalar_select 0, %s7, %s5
  $region1: #{tpu_custom_call.1} parent=0
    #allocation3 [shape = 'u8[512]{0}', space=smem, size = 0x200, scoped, tag = 'input window, operand 1, single buffered']
    #allocation4 [shape = 's32[1]{0}', space=sflag, size = 0x4, scoped, tag = 'scoped memory for tpu_custom_call.1']
    #allocation5 [shape = 's32[1]{0}', space=sflag, size = 0x4, scoped, tag = 'scoped memory for tpu_custom_call.1']
    #allocation6 [shape = 'u8[512]{0}', space=vmem, size = 0x400, scoped, tag = 'output window, operand 0, single buffered']
    #allocation7 [shape = 'u8[512]{0}', space=vmem, size = 0x400, scoped, tag = 'output window, operand 1, single buffered']
    #allocation8 [shape = 's32[1]{0}', space=sflag, size = 0x4, scoped, tag = 'scoped memory for tpu_custom_call.1']
    %9 = vsyncpa [#allocation5], 0
    %10 = vsyncpa [#allocation4], 0
    %11 = vsyncpa [#allocation8], 0
    // Predicated region
    $region2: #{tpu_custom_call.1} parent=1 // pred_check
      _
    $region3: #{tpu_custom_call.1} parent=1 // pred_check_branch
      %13 = sbr.rel (0) target = $region5
    $region4: #{tpu_custom_call.1} parent=1 // pred_region
      _
    $region5: #{tpu_custom_call.1} parent=1 // pred_fallthru
      _
    // Predicated region
    $region6: #{tpu_custom_call.1} parent=1 // pred_check
      _
    $region7: #{tpu_custom_call.1} parent=1 // pred_check_branch
      %15 = sbr.rel (0) target = $region9
    $region8: #{tpu_custom_call.1} parent=1 // pred_region
      %s17 = ssub.s32 16, 16
      %18 = vsyncadd [#allocation5], %s17
      %s20 = sshll.u32 %s1, 4
      %s21 = int_to_ptr.vmem [resolvable:$true] %s20
      %23 = dma.vmem_to_smem %s21, 16, [#allocation3], [#allocation5]
    $region9: #{tpu_custom_call.1} parent=1 // pred_fallthru
      _
    // Predicated region
    $region10: #{tpu_custom_call.1} parent=1 // pred_check
      _
    $region11: #{tpu_custom_call.1} parent=1 // pred_check_branch
      %25 = sbr.rel (0) target = $region13
    $region12: #{tpu_custom_call.1} parent=1 // pred_region
      %26 = dma.done [#allocation5], 16
    $region13: #{tpu_custom_call.1} parent=1 // pred_fallthru
      _
    %27 = sfence
    %p28 = scmp.eq.s32.totalorder 0, 0
    // Predicated region
    $region14: #{tpu_custom_call.1} parent=1 // pred_check
      %p29 = pneg %p28
    $region15: #{tpu_custom_call.1} parent=1 // pred_check_branch
      %31 = sbr.rel (%p29) target = $region17
    $region16: #{tpu_custom_call.1} parent=1 // pred_region
      %vm32 = vcmask 0
      %33 = vst.msk [vmem:[#allocation6] sm:$0x1] %vm32, 0.0
      %34 = vst.msk [vmem:[#allocation7] sm:$0x1] %vm32, 0.0
    $region17: #{tpu_custom_call.1} parent=1 // pred_fallthru
      _
    %35 = vst [vmem:[#allocation2] sm:$0xff] 0.0
    %v36 = vld [vmem:[%s0] sm:$0xff]
    %vm37 = vcmask 23552
    %38 = vst.msk [vmem:[#allocation2] sm:$0xff] %vm37, %v36
    %v39 = vld [vmem:[#allocation2] sm:$0xff]
    %s40 = sld [smem:[#allocation3]]
    %v41 = vstv %s40
    %v42 = vmul.f32 %v39, %v41
    %43 = vrot.lane.b32.xlu0 %v39, 1
    %v44 = vpop.permute.xlu0 %43
    %s45 = sld [smem:[#allocation3 + $0x1]]
    %v46 = vstv %s45
    %v47 = vmul.f32 %v44, %v46
    %48 = vrot.lane.b32.xlu0 %v39, 2
    %v49 = vpop.permute.xlu0 %48
    %s50 = sld [smem:[#allocation3 + $0x2]]
    %v51 = vstv %s50
    %v52 = vmul.f32 %v49, %v51
    %v53 = vadd.f32 %v42, %v52
    %v54 = vadd.f32 %v53, %v47
    %v55 = vld [vmem:[#allocation6] sm:$0x1]
    %56 = vadd.xlane.f32.xlu0 %v54
    %v57 = vpop.xlane.xlu0 %56
    %v58 = vrot.slane %v57, 4
    %v59 = vadd.f32 %v57, %v58
    %v60 = vrot.slane %v59, 2
    %v61 = vadd.f32 %v59, %v60
    %v62 = vrot.slane %v61, 1
    %v63 = vadd.f32 %v61, %v62
    %v64 = vadd.f32 %v55, %v63
    %vm65 = vcmask 0
    %66 = vst.msk [vmem:[#allocation6] sm:$0x1] %vm65, %v64
    %v67 = vld [vmem:[#allocation7] sm:$0x1]
    %v68 = vmul.f32 %v54, %v54
    %69 = vadd.xlane.f32.xlu0 %v68
    %v70 = vpop.xlane.xlu0 %69
    %v71 = vrot.slane %v70, 4
    %v72 = vadd.f32 %v70, %v71
    %v73 = vrot.slane %v72, 2
    %v74 = vadd.f32 %v72, %v73
    %v75 = vrot.slane %v74, 1
    %v76 = vadd.f32 %v74, %v75
    %v77 = vadd.f32 %v67, %v76
    %78 = vst.msk [vmem:[#allocation7] sm:$0x1] %vm65, %v77
    // Predicated region
    $region18: #{tpu_custom_call.1} parent=1 // pred_check
      _
    $region19: #{tpu_custom_call.1} parent=1 // pred_check_branch
      %80 = sbr.rel (0) target = $region21
    $region20: #{tpu_custom_call.1} parent=1 // pred_region
      %s82 = ssub.s32 16, 16
      %83 = vsyncadd [#allocation4], %s82
      %s85 = sshll.u32 [#allocation6], 4
      %s86 = int_to_ptr.vmem [resolvable:$true] %s85
      %88 = dma.vmem_to_hbm [thread:$0]  %s86, 16, %s2, [#allocation4]
    $region21: #{tpu_custom_call.1} parent=1 // pred_fallthru
      _
    // Predicated region
    $region22: #{tpu_custom_call.1} parent=1 // pred_check
      _
    $region23: #{tpu_custom_call.1} parent=1 // pred_check_branch
      %90 = sbr.rel (0) target = $region25
    $region24: #{tpu_custom_call.1} parent=1 // pred_region
      %s92 = ssub.s32 16, 16
      %93 = vsyncadd [#allocation8], %s92
      %s95 = sshll.u32 [#allocation7], 4
      %s96 = int_to_ptr.vmem [resolvable:$true] %s95
      %98 = dma.vmem_to_hbm [thread:$0]  %s96, 16, %s3, [#allocation8]
    $region25: #{tpu_custom_call.1} parent=1 // pred_fallthru
      _
    // Predicated region
    $region26: #{tpu_custom_call.1} parent=1 // pred_check
      _
    $region27: #{tpu_custom_call.1} parent=1 // pred_check_branch
      %100 = sbr.rel (0) target = $region29
    $region28: #{tpu_custom_call.1} parent=1 // pred_region
      %101 = dma.done [#allocation4], 16
    $region29: #{tpu_custom_call.1} parent=1 // pred_fallthru
      _
    // Predicated region
    $region30: #{tpu_custom_call.1} parent=1 // pred_check
      _
    $region31: #{tpu_custom_call.1} parent=1 // pred_check_branch
      %103 = sbr.rel (0) target = $region33
    $region32: #{tpu_custom_call.1} parent=1 // pred_region
      %104 = dma.done [#allocation8], 16
    $region33: #{tpu_custom_call.1} parent=1 // pred_fallthru
      _
    %105 = vsyncpa [#allocation4], 1
    %106 = vsyncpa [#allocation8], 1
    %107 = vsyncpa [#allocation5], 1

</llo_original>
